<compile_context>
chip_gen: v5e
topology: v5e:2x2
jax: 0.10.0
libtpu: 0.0.40
codegen_flags: <defaults>
</compile_context>

<pallas_src>
import functools

import numpy as np
import jax
import jax.numpy as jnp
from jax import lax
from jax.experimental import pallas as pl
from jax.experimental.pallas import tpu as pltpu

BN_EPS = 1e-5
_SQRT_HALF = 0.7071067811865476


# -----------------------------------------------------------------------------
# In-kernel math helpers
# -----------------------------------------------------------------------------
def _erf(x):
    """erf via Abramowitz & Stegun 7.1.26 (|error| <= 1.5e-7); exp/div/select only,
    so it lowers cleanly on the TPU VPU/EUP."""
    p = 0.3275911
    a1, a2, a3, a4, a5 = 0.254829592, -0.284496736, 1.421413741, -1.453152027, 1.061405429
    ax = jnp.abs(x)
    t = 1.0 / (1.0 + p * ax)
    poly = t * (a1 + t * (a2 + t * (a3 + t * (a4 + t * a5))))
    y = 1.0 - poly * jnp.exp(-ax * ax)
    return jnp.where(x >= 0, y, -y)


def _gelu_exact(x):
    """Exact (erf-form) GELU, matching PyTorch's default nn.GELU()."""
    return 0.5 * x * (1.0 + _erf(x * _SQRT_HALF))


# -----------------------------------------------------------------------------
# Pallas kernel: fused  BN(eval) -> GELU -> 1x1 conv -> +bias -> +fn(x)   (NCHW)
# -----------------------------------------------------------------------------
def _shortcut_residual_kernel(x_ref, fn_ref, wt_ref, sc_ref, sh_ref, b_ref, o_ref):
    # x_ref : (Cin,  T)    io dtype   input tile (HW flattened on the lane axis)
    # fn_ref: (Cout, T)    io dtype   fn(x) tile (aliased with the output buffer)
    # wt_ref: (Cout, Cin)  bf16       1x1 conv weight (PyTorch layout, resident)
    # sc_ref: (Cin, 1)     f32        folded BatchNorm scale (lane-broadcast)
    # sh_ref: (Cin, 1)     f32        folded BatchNorm shift
    # b_ref : (Cout, 1)    f32        conv bias
    # o_ref : (Cout, T)    io dtype
    z = x_ref[...].astype(jnp.float32) * sc_ref[...] + sh_ref[...]   # folded BN (eval)
    z = _gelu_exact(z)                                               # GELU (f32)
    y = jnp.dot(wt_ref[...], z.astype(wt_ref.dtype),                 # 1x1 conv == MXU matmul
                preferred_element_type=jnp.float32)
    o_ref[...] = (y + b_ref[...] + fn_ref[...].astype(jnp.float32)).astype(o_ref.dtype)


def _choose_tile_hw(hw, cin, cout, in_bytes, out_bytes):
    """Largest HW tile (multiple of 128, <= 1024) whose double-buffered working set
    stays well inside v7x's 64 MiB physical VMEM."""
    budget = 40 * 1024 * 1024
    per_row = 2 * (cin + cout) * in_bytes + 2 * cout * out_bytes   # dbl-buffered x, fn, out
    cap = max(128, min(1024, (budget // max(per_row, 1)) // 128 * 128))
    if hw <= cap:
        return hw                     # single full-extent tile: no padding ever needed
    best = cap
    for t in range(cap, 127, -128):
        if hw % t == 0:
            best = t                  # evenly dividing tile: no ragged tail
            break
    # Don't shrink below half the cap just to divide evenly; ragged tails are clipped.
    return best if best * 2 >= cap else cap


def _call_shortcut_residual(x_ncl, fn_ncl, w_t, scale, shift, bias, tile_hw):
    n, cin, hw = x_ncl.shape
    cout = w_t.shape[0]
    num_tiles = pl.cdiv(hw, tile_hw)
    io_bytes = x_ncl.dtype.itemsize

    # VMEM budget (double-buffered x / fn / out tiles + resident weight) with headroom,
    # capped at 48 MiB so a tile that compiles on v5e/v6e never overflows v7x's 64 MiB.
    vmem_need = 2 * tile_hw * (cin + 2 * cout) * io_bytes + 2 * cout * cin + 256
    vmem_limit = int(min(48 * 1024 * 1024, max(32 * 1024 * 1024, 4 * vmem_need)))

    flops = 2 * n * hw * cin * cout + 14 * n * hw * cin + 2 * n * hw * cout
    bytes_accessed = (io_bytes * (x_ncl.size + 2 * fn_ncl.size)
                      + 2 * w_t.size + 4 * (scale.size + shift.size + bias.size))

    return pl.pallas_call(
        _shortcut_residual_kernel,
        out_shape=jax.ShapeDtypeStruct((n, cout, hw), x_ncl.dtype),
        grid_spec=pltpu.PrefetchScalarGridSpec(
            num_scalar_prefetch=0,
            grid=(n, num_tiles),
            in_specs=[
                pl.BlockSpec((pl.Squeezed(), cin, tile_hw), lambda b, t: (b, 0, t)),
                pl.BlockSpec((pl.Squeezed(), cout, tile_hw), lambda b, t: (b, 0, t)),
                pl.BlockSpec((cout, cin), lambda b, t: (0, 0)),   # weight stays resident
                pl.BlockSpec((cin, 1), lambda b, t: (0, 0)),
                pl.BlockSpec((cin, 1), lambda b, t: (0, 0)),
                pl.BlockSpec((cout, 1), lambda b, t: (0, 0)),
            ],
            out_specs=pl.BlockSpec((pl.Squeezed(), cout, tile_hw), lambda b, t: (b, 0, t)),
        ),
        input_output_aliases={1: 0},   # fn(x) buffer re-used as the output buffer
        compiler_params=pltpu.CompilerParams(
            dimension_semantics=("parallel", "parallel"),
            vmem_limit_bytes=vmem_limit,
        ),
        cost_estimate=pl.CostEstimate(
            flops=int(flops),
            transcendentals=int(n * hw * cin),
            bytes_accessed=int(bytes_accessed),
        ),
    )(x_ncl, fn_ncl, w_t, scale, shift, bias)


# -----------------------------------------------------------------------------
# JAX wrapper (layout plumbing only: free reshapes + boundary dtype cast)
# -----------------------------------------------------------------------------
@functools.partial(jax.jit, static_argnames=("io_dtype",))
def mbconv_residual_forward(params, x, fn_out, io_dtype=jnp.bfloat16):
    """x: (N, Cin, H, W) NCHW; fn_out = fn(x): (N, Cout, H, W).
    Returns (N, Cout, H, W) in `io_dtype` (bf16 by default: the op is HBM-bound)."""
    io_dtype = np.dtype(io_dtype)
    n, cin, h, w = x.shape
    cout = params["w"].shape[0]
    hw = h * w

    # NCHW -> (N, C, HW): pure reshape (no transpose). The dtype cast at the HBM
    # boundary is the only copy, and only when io_dtype differs from the input dtype.
    x_ncl = x.reshape(n, cin, hw).astype(io_dtype)
    fn_ncl = fn_out.reshape(n, cout, hw).astype(io_dtype)

    # 1x1 conv weight (Cout, Cin, 1, 1) -> (Cout, Cin) bf16 MXU operand; (Cout, 1) f32 bias.
    w_t = params["w"].reshape(cout, cin).astype(jnp.bfloat16)
    bias = params["b"].reshape(cout, 1).astype(jnp.float32)

    # Fold eval-mode BatchNorm into per-channel scale/shift columns (lane-broadcast).
    gamma, beta, mean, var = params["bn"]
    scale_v = gamma * lax.rsqrt(var + BN_EPS)
    shift_v = beta - mean * scale_v
    scale = scale_v.reshape(cin, 1).astype(jnp.float32)
    shift = shift_v.reshape(cin, 1).astype(jnp.float32)

    tile_hw = _choose_tile_hw(hw, cin, cout, io_dtype.itemsize, io_dtype.itemsize)
    out = _call_shortcut_residual(x_ncl, fn_ncl, w_t, scale, shift, bias, tile_hw)
    return out.reshape(n, cout, h, w)


def init_mbconv_residual_params(key, dim_in, dim_out):
    """Synthetic parameters matching nn.Sequential(BatchNorm2d, GELU, Conv2d(dim_in, dim_out, 1));
    conv weight kept in the PyTorch (Cout, Cin, 1, 1) layout."""
    k_w, k_b, k_g, k_be, k_m, k_v = jax.random.split(key, 6)
    w = jax.random.normal(k_w, (dim_out, dim_in, 1, 1), jnp.float32) / jnp.sqrt(dim_in)
    b = 0.1 * jax.random.normal(k_b, (dim_out,), jnp.float32)
    gamma = 1.0 + 0.1 * jax.random.normal(k_g, (dim_in,), jnp.float32)
    beta = 0.1 * jax.random.normal(k_be, (dim_in,), jnp.float32)
    mean = 0.1 * jax.random.normal(k_m, (dim_in,), jnp.float32)
    var = 0.5 + jnp.abs(jax.random.normal(k_v, (dim_in,), jnp.float32))
    return {"w": w, "b": b, "bn": (gamma, beta, mean, var)}


# -----------------------------------------------------------------------------
# Pure-JAX references (for correctness checks)
# -----------------------------------------------------------------------------
def _ref_forward(params, x, fn_out, io_dtype=None, matmul_dtype=jnp.float32,
                 quantize_out=False):
    """NCHW reference. Optionally emulates the kernel's bf16 boundary / MXU casts."""
    f32 = jnp.float32
    xq = x if io_dtype is None else x.astype(io_dtype).astype(f32)
    fnq = fn_out if io_dtype is None else fn_out.astype(io_dtype).astype(f32)
    gamma, beta, mean, var = params["bn"]
    scale = gamma * lax.rsqrt(var + BN_EPS)
    shift = beta - mean * scale
    z = xq * scale[None, :, None, None] + shift[None, :, None, None]
    z = jax.nn.gelu(z, approximate=False)                       # exact GELU (nn.GELU default)
    zq = z.astype(matmul_dtype).astype(f32)
    wq = params["w"].reshape(params["w"].shape[0], -1).astype(matmul_dtype).astype(f32)
    s = jnp.einsum("oi,nihw->nohw", wq, zq) + params["b"][None, :, None, None]
    out = fnq + s
    if quantize_out and io_dtype is not None:
        out = out.astype(io_dtype).astype(f32)
    return out


if __name__ == "__main__":
    key = jax.random.PRNGKey(0)
    k_p, k_x, k_f = jax.random.split(key, 3)

    batch, dim_in, dim_out, hw_sz = 2, 4, 8, 16
    params = init_mbconv_residual_params(k_p, dim_in, dim_out)
    x = jax.random.normal(k_x, (batch, dim_in, hw_sz, hw_sz), jnp.float32)
    # Stand-in for `out = self.fn(x)` (fn is an arbitrary injected submodule).
    fn_out = jax.random.normal(k_f, (batch, dim_out, hw_sz, hw_sz), jnp.float32)

    # Default path: bf16 HBM I/O (bandwidth-bound op on v5e/v6e/v7x).
    out_bf16 = jax.block_until_ready(mbconv_residual_forward(params, x, fn_out))
    assert out_bf16.shape == (batch, dim_out, hw_sz, hw_sz), out_bf16.shape
    assert out_bf16.dtype == jnp.bfloat16, out_bf16.dtype
    out_f = out_bf16.astype(jnp.float32)

    # Tight check vs a reference that applies the same bf16 boundary / MXU casts.
    ref_q = _ref_forward(params, x, fn_out, io_dtype=jnp.bfloat16,
                         matmul_dtype=jnp.bfloat16, quantize_out=True)
    assert jnp.allclose(out_f, ref_q, rtol=2e-2, atol=2e-2), \
        float(jnp.max(jnp.abs(out_f - ref_q)))

    # Loose sanity check vs the exact full-f32 reference (bf16 I/O + bf16 MXU => loose tol).
    ref_exact = _ref_forward(params, x, fn_out, io_dtype=None, matmul_dtype=jnp.float32)
    assert jnp.allclose(out_f, ref_exact, rtol=1e-1, atol=2e-1), \
        float(jnp.max(jnp.abs(out_f - ref_exact)))

    # f32 HBM I/O path (for consumers that cannot take bf16 outputs).
    out_f32 = jax.block_until_ready(
        mbconv_residual_forward(params, x, fn_out, io_dtype=jnp.float32))
    assert out_f32.dtype == jnp.float32, out_f32.dtype
    ref_f32io = _ref_forward(params, x, fn_out, io_dtype=None, matmul_dtype=jnp.bfloat16)
    assert jnp.allclose(out_f32, ref_f32io, rtol=1e-3, atol=2e-3), \
        float(jnp.max(jnp.abs(out_f32 - ref_f32io)))

    print("KERNEL_OK")
</pallas_src>

<mosaic_0001>
module attributes {stable_mosaic.version = 11 : i64} {
  func.func @_shortcut_residual_kernel(%arg0: i32, %arg1: i32, %arg2: memref<1x4x256xbf16, #tpu.memory_space<vmem>>, %arg3: memref<1x8x256xbf16, #tpu.memory_space<vmem>>, %arg4: memref<8x4xbf16, #tpu.memory_space<vmem>>, %arg5: memref<4x1xf32, #tpu.memory_space<vmem>>, %arg6: memref<4x1xf32, #tpu.memory_space<vmem>>, %arg7: memref<8x1xf32, #tpu.memory_space<vmem>>, %arg8: memref<1x8x256xbf16, #tpu.memory_space<vmem>>) attributes {dimension_semantics = [#tpu.dimension_semantics<parallel>, #tpu.dimension_semantics<parallel>], iteration_bounds = array<i64: 2, 1>, scalar_prefetch = 0 : i64, scratch_operands = 0 : i64, tpu.core_type = #tpu.core_type<tc>, window_params = [{transform_indices = @transform_0, window_bounds = array<i64: 1, 4, 256>}, {transform_indices = @transform_1, window_bounds = array<i64: 1, 8, 256>}, {pipeline_mode = #tpu.pipeline_mode<synchronous>, transform_indices = @transform_2, window_bounds = array<i64: 8, 4>}, {pipeline_mode = #tpu.pipeline_mode<synchronous>, transform_indices = @transform_3, window_bounds = array<i64: 4, 1>}, {pipeline_mode = #tpu.pipeline_mode<synchronous>, transform_indices = @transform_4, window_bounds = array<i64: 4, 1>}, {pipeline_mode = #tpu.pipeline_mode<synchronous>, transform_indices = @transform_5, window_bounds = array<i64: 8, 1>}, {transform_indices = @transform_6, window_bounds = array<i64: 1, 8, 256>}]} {
    %c0 = arith.constant 0 : index
    %c0_0 = arith.constant 0 : index
    %c0_1 = arith.constant 0 : index
    %0 = vector.load %arg2[%c0, %c0_0, %c0_1] : memref<1x4x256xbf16, #tpu.memory_space<vmem>>, vector<1x4x256xbf16>
    %1 = vector.shape_cast %0 : vector<1x4x256xbf16> to vector<4x256xbf16>
    %2 = arith.extf %1 : vector<4x256xbf16> to vector<4x256xf32>
    %c0_2 = arith.constant 0 : index
    %c0_3 = arith.constant 0 : index
    %3 = vector.load %arg5[%c0_2, %c0_3] : memref<4x1xf32, #tpu.memory_space<vmem>>, vector<4x1xf32>
    %4 = vector.broadcast %3 : vector<4x1xf32> to vector<4x256xf32>
    %5 = arith.mulf %2, %4 : vector<4x256xf32>
    %c0_4 = arith.constant 0 : index
    %c0_5 = arith.constant 0 : index
    %6 = vector.load %arg6[%c0_4, %c0_5] : memref<4x1xf32, #tpu.memory_space<vmem>>, vector<4x1xf32>
    %7 = vector.broadcast %6 : vector<4x1xf32> to vector<4x256xf32>
    %8 = arith.addf %5, %7 : vector<4x256xf32>
    %cst = arith.constant 5.000000e-01 : f32
    %9 = vector.broadcast %cst : f32 to vector<4x256xf32>
    %10 = arith.mulf %9, %8 : vector<4x256xf32>
    %cst_6 = arith.constant 0.707106769 : f32
    %11 = vector.broadcast %cst_6 : f32 to vector<4x256xf32>
    %12 = arith.mulf %8, %11 : vector<4x256xf32>
    %13 = math.absf %12 : vector<4x256xf32>
    %cst_7 = arith.constant 0.327591091 : f32
    %14 = vector.broadcast %cst_7 : f32 to vector<4x256xf32>
    %15 = arith.mulf %14, %13 : vector<4x256xf32>
    %cst_8 = arith.constant 1.000000e+00 : f32
    %16 = vector.broadcast %cst_8 : f32 to vector<4x256xf32>
    %17 = arith.addf %16, %15 : vector<4x256xf32>
    %cst_9 = arith.constant 1.000000e+00 : f32
    %18 = vector.broadcast %cst_9 : f32 to vector<4x256xf32>
    %19 = arith.divf %18, %17 : vector<4x256xf32>
    %cst_10 = arith.constant 1.06140542 : f32
    %20 = vector.broadcast %cst_10 : f32 to vector<4x256xf32>
    %21 = arith.mulf %19, %20 : vector<4x256xf32>
    %cst_11 = arith.constant -1.45315206 : f32
    %22 = vector.broadcast %cst_11 : f32 to vector<4x256xf32>
    %23 = arith.addf %22, %21 : vector<4x256xf32>
    %24 = arith.mulf %19, %23 : vector<4x256xf32>
    %cst_12 = arith.constant 1.42141378 : f32
    %25 = vector.broadcast %cst_12 : f32 to vector<4x256xf32>
    %26 = arith.addf %25, %24 : vector<4x256xf32>
    %27 = arith.mulf %19, %26 : vector<4x256xf32>
    %cst_13 = arith.constant -0.284496725 : f32
    %28 = vector.broadcast %cst_13 : f32 to vector<4x256xf32>
    %29 = arith.addf %28, %27 : vector<4x256xf32>
    %30 = arith.mulf %19, %29 : vector<4x256xf32>
    %cst_14 = arith.constant 0.254829586 : f32
    %31 = vector.broadcast %cst_14 : f32 to vector<4x256xf32>
    %32 = arith.addf %31, %30 : vector<4x256xf32>
    %33 = arith.mulf %19, %32 : vector<4x256xf32>
    %cst_15 = arith.constant 0.000000e+00 : f32
    %34 = vector.broadcast %cst_15 : f32 to vector<4x256xf32>
    %35 = arith.subf %34, %13 : vector<4x256xf32>
    %36 = arith.mulf %35, %13 : vector<4x256xf32>
    %37 = math.exp %36 : vector<4x256xf32>
    %38 = arith.mulf %33, %37 : vector<4x256xf32>
    %cst_16 = arith.constant 1.000000e+00 : f32
    %39 = vector.broadcast %cst_16 : f32 to vector<4x256xf32>
    %40 = arith.subf %39, %38 : vector<4x256xf32>
    %cst_17 = arith.constant 0.000000e+00 : f32
    %41 = vector.broadcast %cst_17 : f32 to vector<4x256xf32>
    %42 = arith.cmpf oge, %12, %41 : vector<4x256xf32>
    %cst_18 = arith.constant 0.000000e+00 : f32
    %43 = vector.broadcast %cst_18 : f32 to vector<4x256xf32>
    %44 = arith.subf %43, %40 : vector<4x256xf32>
    %45 = arith.select %42, %40, %44 : vector<4x256xi1>, vector<4x256xf32>
    %cst_19 = arith.constant 1.000000e+00 : f32
    %46 = vector.broadcast %cst_19 : f32 to vector<4x256xf32>
    %47 = arith.addf %46, %45 : vector<4x256xf32>
    %48 = arith.mulf %10, %47 : vector<4x256xf32>
    %c0_20 = arith.constant 0 : index
    %c0_21 = arith.constant 0 : index
    %49 = vector.load %arg4[%c0_20, %c0_21] : memref<8x4xbf16, #tpu.memory_space<vmem>>, vector<8x4xbf16>
    %50 = arith.truncf %48 : vector<4x256xf32> to vector<4x256xbf16>
    %cst_22 = arith.constant dense<0.000000e+00> : vector<8x256xf32>
    %51 = tpu.matmul %49, %50, %cst_22 {dimension_numbers = #tpu.dot_dimension_numbers<[1], [0], [0], [1], [0, 0, 1, 1], [], []>} : vector<8x4xbf16>, vector<4x256xbf16>, vector<8x256xf32> -> vector<8x256xf32>
    %c0_23 = arith.constant 0 : index
    %c0_24 = arith.constant 0 : index
    %52 = vector.load %arg7[%c0_23, %c0_24] : memref<8x1xf32, #tpu.memory_space<vmem>>, vector<8x1xf32>
    %53 = vector.broadcast %52 : vector<8x1xf32> to vector<8x256xf32>
    %54 = arith.addf %51, %53 : vector<8x256xf32>
    %c0_25 = arith.constant 0 : index
    %c0_26 = arith.constant 0 : index
    %c0_27 = arith.constant 0 : index
    %55 = vector.load %arg3[%c0_25, %c0_26, %c0_27] : memref<1x8x256xbf16, #tpu.memory_space<vmem>>, vector<1x8x256xbf16>
    %56 = vector.shape_cast %55 : vector<1x8x256xbf16> to vector<8x256xbf16>
    %57 = arith.extf %56 : vector<8x256xbf16> to vector<8x256xf32>
    %58 = arith.addf %54, %57 : vector<8x256xf32>
    %59 = arith.truncf %58 : vector<8x256xf32> to vector<8x256xbf16>
    %c0_28 = arith.constant 0 : index
    %c0_29 = arith.constant 0 : index
    %c0_30 = arith.constant 0 : index
    %60 = vector.load %arg8[%c0_28, %c0_29, %c0_30] : memref<1x8x256xbf16, #tpu.memory_space<vmem>>, vector<1x8x256xbf16>
    %61 = vector.shape_cast %60 : vector<1x8x256xbf16> to vector<8x256xbf16>
    %62 = vector.shape_cast %59 : vector<8x256xbf16> to vector<1x8x256xbf16>
    tpu.vector_store %arg8[%c0_28, %c0_29, %c0_30], %62 {strides = array<i32>} : memref<1x8x256xbf16, #tpu.memory_space<vmem>>, vector<1x8x256xbf16>,
    return
  }
  func.func @transform_0(%arg0: i32, %arg1: i32) -> (i32, i32, i32) {
    %c0_i32 = arith.constant 0 : i32
    %c0_i32_0 = arith.constant 0 : i32
    return %arg0, %c0_i32, %arg1 : i32, i32, i32
  }
  func.func @transform_1(%arg0: i32, %arg1: i32) -> (i32, i32, i32) {
    %c0_i32 = arith.constant 0 : i32
    %c0_i32_0 = arith.constant 0 : i32
    return %arg0, %c0_i32, %arg1 : i32, i32, i32
  }
  func.func @transform_2(%arg0: i32, %arg1: i32) -> (i32, i32) {
    %c0_i32 = arith.constant 0 : i32
    %c0_i32_0 = arith.constant 0 : i32
    %c0_i32_1 = arith.constant 0 : i32
    return %c0_i32, %c0_i32_0 : i32, i32
  }
  func.func @transform_3(%arg0: i32, %arg1: i32) -> (i32, i32) {
    %c0_i32 = arith.constant 0 : i32
    %c0_i32_0 = arith.constant 0 : i32
    %c0_i32_1 = arith.constant 0 : i32
    return %c0_i32, %c0_i32_0 : i32, i32
  }
  func.func @transform_4(%arg0: i32, %arg1: i32) -> (i32, i32) {
    %c0_i32 = arith.constant 0 : i32
    %c0_i32_0 = arith.constant 0 : i32
    %c0_i32_1 = arith.constant 0 : i32
    return %c0_i32, %c0_i32_0 : i32, i32
  }
  func.func @transform_5(%arg0: i32, %arg1: i32) -> (i32, i32) {
    %c0_i32 = arith.constant 0 : i32
    %c0_i32_0 = arith.constant 0 : i32
    %c0_i32_1 = arith.constant 0 : i32
    return %c0_i32, %c0_i32_0 : i32, i32
  }
  func.func @transform_6(%arg0: i32, %arg1: i32) -> (i32, i32, i32) {
    %c0_i32 = arith.constant 0 : i32
    %c0_i32_0 = arith.constant 0 : i32
    return %arg0, %c0_i32, %arg1 : i32, i32, i32
  }
}

</mosaic_0001>

<llo_original>
// kernel: mbconv_residual_forward.1
$region0: #{mbconv_residual_forward.1}
  #allocation0 [shape = 'u32[]', space=smem, size = 0x4, offset = 0x4, fixed_abs, tag = 'smem constant byte address 0x4 - core index']
  #allocation1 [shape = 'u32[72,128]{1,0:T(1,128)}', space=vmem, size = 0x9000, scoped, tag = 'internal scratch']
  %s0 = inlined_call_operand.vmem [shape: bf16[2,4,256], index: 0, kind: input, shape index: {}]
  %s1 = inlined_call_operand.vmem [shape: bf16[2,8,256], index: 1, kind: input, shape index: {}, may-alias: {1,6}]
  %s2 = inlined_call_operand.vmem [shape: bf16[8,4], index: 2, kind: input, shape index: {}]
  %s3 = inlined_call_operand.vmem [shape: f32[4,1], index: 3, kind: input, shape index: {}]
  %s4 = inlined_call_operand.vmem [shape: f32[4,1], index: 4, kind: input, shape index: {}]
  %s5 = inlined_call_operand.vmem [shape: f32[8,1], index: 5, kind: input, shape index: {}]
  %s6 = inlined_call_operand.vmem [shape: bf16[2,8,256], index: 6, kind: output, shape index: {}, may-alias: {1,6}]
  %s7 = sld [smem:[#allocation0]]
  $region57: #{mbconv_residual_forward.1} parent=0
    _
  %s9 = ssub.s32 1, %s7
  %s10 = scalar_select 0, %s9, %s7
  loop: start=0, step=1, limit=4
  $region2: #{mbconv_residual_forward.1} parent=0 // loop_pre_header
    _
  $region3: #{mbconv_residual_forward.1} parent=0 // loop_header
    %s12 = sphi 0, %s16
    %p13 = scmp.ge.s32.totalorder %s12, 4
    %s19 = sphi 0, %s31
    %s20 = sphi 0, %s27
    %s21 = sphi 0, %s19
    %s22 = sphi 0, %s20
    %s23 = sphi 0, %s21
    %s24 = sphi 0, %s22
    %s36 = sphi 0, %s38
    %s39 = sphi 0, %s36
    %s40 = sphi 0, %s39
    %s56 = sphi 0, %s40
    %s64 = sphi 0, %s66
    %s67 = sphi 0, %s64
    %s68 = sphi 0, %s67
    %s84 = sphi 0, %s68
    %s88 = sphi 0, %s88
    %s90 = sphi 0, %s88
    %s91 = sphi 0, %s90
    %s105 = sphi 0, %s91
    %s109 = sphi 0, %s109
    %s111 = sphi 0, %s109
    %s112 = sphi 0, %s111
    %s126 = sphi 0, %s112
    %s130 = sphi 0, %s130
    %s132 = sphi 0, %s130
    %s133 = sphi 0, %s132
    %s147 = sphi 0, %s133
    %s151 = sphi 0, %s151
    %s153 = sphi 0, %s151
    %s154 = sphi 0, %s153
    %s168 = sphi 0, %s154
    %s176 = sphi 0, %s178
    %s179 = sphi 0, %s176
    %s180 = sphi 0, %s179
    %s196 = sphi 0, %s180
  $region4: #{mbconv_residual_forward.1} parent=0 // loop_header_branch
    %15 = sbr.rel (%p13) target = $region8
  $region5: #{mbconv_residual_forward.1} parent=0 // loop_body
    %s17 = ssub.s32 %s12, 1
    %s18 = ssub.s32 %s12, 2
    %s25 = sadd.s32 1, %s20
    %p26 = scmp.ge.s32.totalorder %s25, 1
    %s27 = scalar_select %p26, 0, %s25
    %s28 = sadd.s32 1, %s19
    %s29 = scalar_select %p26, %s28, %s19
    %p30 = scmp.ge.s32.totalorder %s29, 2
    %s31 = scalar_select %p30, 0, %s29
    %s32 = ssub.s32 %s19, %s31
    %s33 = ssub.s32 %s20, %s27
    %s34 = sor.u32 %s32, %s33
    %p35 = scmp.eq.s32.totalorder %s34, 0
    %s37 = sadd.s32 %s36, 1
    %s38 = scalar_select %p35, %s36, %s37
    %p41 = pneg %p35
    %p42 = scmp.eq.s32.totalorder %s12, 1
    %p43 = por %p41, %p42
    %p44 = scmp.ne.s32.totalorder %s36, %s39
    %p45 = scmp.eq.s32.totalorder %s12, 0
    %p46 = por %p44, %p45
    %p47 = scmp.ne.s32.totalorder %s36, %s39
    %p48 = scmp.eq.s32.totalorder %s17, 1
    %p49 = por %p47, %p48
    %p50 = scmp.ne.s32.totalorder %s39, %s40
    %p51 = scmp.eq.s32.totalorder %s17, 0
    %p52 = por %p50, %p51
    %p53 = scmp.ne.s32.totalorder %s39, %s40
    %p54 = scmp.eq.s32.totalorder %s18, 1
    %p55 = por %p53, %p54
    %p57 = scmp.ne.s32.totalorder %s40, %s56
    %p58 = scmp.eq.s32.totalorder %s18, 0
    %p59 = por %p57, %p58
    %s60 = ssub.s32 %s19, %s31
    %s61 = ssub.s32 %s20, %s27
    %s62 = sor.u32 %s60, %s61
    %p63 = scmp.eq.s32.totalorder %s62, 0
    %s65 = sadd.s32 %s64, 1
    %s66 = scalar_select %p63, %s64, %s65
    %p69 = pneg %p63
    %p70 = scmp.eq.s32.totalorder %s12, 1
    %p71 = por %p69, %p70
    %p72 = scmp.ne.s32.totalorder %s64, %s67
    %p73 = scmp.eq.s32.totalorder %s12, 0
    %p74 = por %p72, %p73
    %p75 = scmp.ne.s32.totalorder %s64, %s67
    %p76 = scmp.eq.s32.totalorder %s17, 1
    %p77 = por %p75, %p76
    %p78 = scmp.ne.s32.totalorder %s67, %s68
    %p79 = scmp.eq.s32.totalorder %s17, 0
    %p80 = por %p78, %p79
    %p81 = scmp.ne.s32.totalorder %s67, %s68
    %p82 = scmp.eq.s32.totalorder %s18, 1
    %p83 = por %p81, %p82
    %p85 = scmp.ne.s32.totalorder %s68, %s84
    %p86 = scmp.eq.s32.totalorder %s18, 0
    %p87 = por %p85, %p86
    %s89 = sadd.s32 %s88, 1
    %p92 = scmp.eq.s32.totalorder %s12, 1
    %p93 = scmp.ne.s32.totalorder %s88, %s90
    %p94 = scmp.eq.s32.totalorder %s12, 0
    %p95 = por %p93, %p94
    %p96 = scmp.ne.s32.totalorder %s88, %s90
    %p97 = scmp.eq.s32.totalorder %s17, 1
    %p98 = por %p96, %p97
    %p99 = scmp.ne.s32.totalorder %s90, %s91
    %p100 = scmp.eq.s32.totalorder %s17, 0
    %p101 = por %p99, %p100
    %p102 = scmp.ne.s32.totalorder %s90, %s91
    %p103 = scmp.eq.s32.totalorder %s18, 1
    %p104 = por %p102, %p103
    %p106 = scmp.ne.s32.totalorder %s91, %s105
    %p107 = scmp.eq.s32.totalorder %s18, 0
    %p108 = por %p106, %p107
    %s110 = sadd.s32 %s109, 1
    %p113 = scmp.eq.s32.totalorder %s12, 1
    %p114 = scmp.ne.s32.totalorder %s109, %s111
    %p115 = scmp.eq.s32.totalorder %s12, 0
    %p116 = por %p114, %p115
    %p117 = scmp.ne.s32.totalorder %s109, %s111
    %p118 = scmp.eq.s32.totalorder %s17, 1
    %p119 = por %p117, %p118
    %p120 = scmp.ne.s32.totalorder %s111, %s112
    %p121 = scmp.eq.s32.totalorder %s17, 0
    %p122 = por %p120, %p121
    %p123 = scmp.ne.s32.totalorder %s111, %s112
    %p124 = scmp.eq.s32.totalorder %s18, 1
    %p125 = por %p123, %p124
    %p127 = scmp.ne.s32.totalorder %s112, %s126
    %p128 = scmp.eq.s32.totalorder %s18, 0
    %p129 = por %p127, %p128
    %s131 = sadd.s32 %s130, 1
    %p134 = scmp.eq.s32.totalorder %s12, 1
    %p135 = scmp.ne.s32.totalorder %s130, %s132
    %p136 = scmp.eq.s32.totalorder %s12, 0
    %p137 = por %p135, %p136
    %p138 = scmp.ne.s32.totalorder %s130, %s132
    %p139 = scmp.eq.s32.totalorder %s17, 1
    %p140 = por %p138, %p139
    %p141 = scmp.ne.s32.totalorder %s132, %s133
    %p142 = scmp.eq.s32.totalorder %s17, 0
    %p143 = por %p141, %p142
    %p144 = scmp.ne.s32.totalorder %s132, %s133
    %p145 = scmp.eq.s32.totalorder %s18, 1
    %p146 = por %p144, %p145
    %p148 = scmp.ne.s32.totalorder %s133, %s147
    %p149 = scmp.eq.s32.totalorder %s18, 0
    %p150 = por %p148, %p149
    %s152 = sadd.s32 %s151, 1
    %p155 = scmp.eq.s32.totalorder %s12, 1
    %p156 = scmp.ne.s32.totalorder %s151, %s153
    %p157 = scmp.eq.s32.totalorder %s12, 0
    %p158 = por %p156, %p157
    %p159 = scmp.ne.s32.totalorder %s151, %s153
    %p160 = scmp.eq.s32.totalorder %s17, 1
    %p161 = por %p159, %p160
    %p162 = scmp.ne.s32.totalorder %s153, %s154
    %p163 = scmp.eq.s32.totalorder %s17, 0
    %p164 = por %p162, %p163
    %p165 = scmp.ne.s32.totalorder %s153, %s154
    %p166 = scmp.eq.s32.totalorder %s18, 1
    %p167 = por %p165, %p166
    %p169 = scmp.ne.s32.totalorder %s154, %s168
    %p170 = scmp.eq.s32.totalorder %s18, 0
    %p171 = por %p169, %p170
    %s172 = ssub.s32 %s19, %s31
    %s173 = ssub.s32 %s20, %s27
    %s174 = sor.u32 %s172, %s173
    %p175 = scmp.eq.s32.totalorder %s174, 0
    %s177 = sadd.s32 %s176, 1
    %s178 = scalar_select %p175, %s176, %s177
    %p181 = pneg %p175
    %p182 = scmp.eq.s32.totalorder %s12, 1
    %p183 = por %p181, %p182
    %p184 = scmp.ne.s32.totalorder %s176, %s179
    %p185 = scmp.eq.s32.totalorder %s12, 0
    %p186 = por %p184, %p185
    %p187 = scmp.ne.s32.totalorder %s176, %s179
    %p188 = scmp.eq.s32.totalorder %s17, 1
    %p189 = por %p187, %p188
    %p190 = scmp.ne.s32.totalorder %s179, %s180
    %p191 = scmp.eq.s32.totalorder %s17, 0
    %p192 = por %p190, %p191
    %p193 = scmp.ne.s32.totalorder %s179, %s180
    %p194 = scmp.eq.s32.totalorder %s18, 1
    %p195 = por %p193, %p194
    %p197 = scmp.ne.s32.totalorder %s180, %s196
    %p198 = scmp.eq.s32.totalorder %s18, 0
    %p199 = por %p197, %p198
    %p200 = scmp.le.s32.totalorder 1, %s12
    %p201 = scmp.lt.s32.totalorder %s12, 3
    %p202 = pnand %p200, %p201
    %p203 = pneg %p202
    // Predicated region
    $region9: #{mbconv_residual_forward.1} parent=5 // pred_check
      _
    $region10: #{mbconv_residual_forward.1} parent=5 // pred_check_branch
      %205 = sbr.rel (%p202) target = $region12
    $region11: #{mbconv_residual_forward.1} parent=5 // pred_region
      %s206 = ssub.s32 %s12, 1
      // Predicated region
      $region13: #{mbconv_residual_forward.1} parent=11 // pred_check
        %p207 = pneg %p101
      $region14: #{mbconv_residual_forward.1} parent=11 // pred_check_branch
        %209 = sbr.rel (%p207) target = $region16
      $region15: #{mbconv_residual_forward.1} parent=11 // pred_region
        _
      $region16: #{mbconv_residual_forward.1} parent=11 // pred_fallthru
        _
      // Predicated region
      $region17: #{mbconv_residual_forward.1} parent=11 // pred_check
        %p210 = pneg %p122
      $region18: #{mbconv_residual_forward.1} parent=11 // pred_check_branch
        %212 = sbr.rel (%p210) target = $region20
      $region19: #{mbconv_residual_forward.1} parent=11 // pred_region
        _
      $region20: #{mbconv_residual_forward.1} parent=11 // pred_fallthru
        _
      // Predicated region
      $region21: #{mbconv_residual_forward.1} parent=11 // pred_check
        %p213 = pneg %p143
      $region22: #{mbconv_residual_forward.1} parent=11 // pred_check_branch
        %215 = sbr.rel (%p213) target = $region24
      $region23: #{mbconv_residual_forward.1} parent=11 // pred_region
        _
      $region24: #{mbconv_residual_forward.1} parent=11 // pred_fallthru
        _
      // Predicated region
      $region25: #{mbconv_residual_forward.1} parent=11 // pred_check
        %p216 = pneg %p164
      $region26: #{mbconv_residual_forward.1} parent=11 // pred_check_branch
        %218 = sbr.rel (%p216) target = $region28
      $region27: #{mbconv_residual_forward.1} parent=11 // pred_region
        _
      $region28: #{mbconv_residual_forward.1} parent=11 // pred_fallthru
        _
    $region12: #{mbconv_residual_forward.1} parent=5 // pred_fallthru
      _
    %p219 = scmp.lt.s32.totalorder %s12, 2
    // Predicated region
    $region29: #{mbconv_residual_forward.1} parent=5 // pred_check
      %p220 = pneg %p219
    $region30: #{mbconv_residual_forward.1} parent=5 // pred_check_branch
      %222 = sbr.rel (%p220) target = $region32
    $region31: #{mbconv_residual_forward.1} parent=5 // pred_region
      // Predicated region
      $region33: #{mbconv_residual_forward.1} parent=31 // pred_check
        %p223 = pneg %p46
      $region34: #{mbconv_residual_forward.1} parent=31 // pred_check_branch
        %225 = sbr.rel (%p223) target = $region36
      $region35: #{mbconv_residual_forward.1} parent=31 // pred_region
        %s226 = smul.u32 2, %s20
        %p227 = scmp.lt.s32.totalorder %s19, 1
        %s228 = scalar_select %p227, %s19, 1
        %p229 = scmp.lt.s32.totalorder %s226, 1
        %s230 = scalar_select %p229, %s226, 1
        %s231 = smul.addr %s228, 2
        %s232 = sadd.s32 %s230, %s231
        %s233 = smul.addr %s232, 2
        %s234 = scalar_lea.vmem %s0, %s233
        %s235 = smul.u32 2, %s20
      $region36: #{mbconv_residual_forward.1} parent=31 // pred_fallthru
        _
      // Predicated region
      $region37: #{mbconv_residual_forward.1} parent=31 // pred_check
        %p236 = pneg %p74
      $region38: #{mbconv_residual_forward.1} parent=31 // pred_check_branch
        %238 = sbr.rel (%p236) target = $region40
      $region39: #{mbconv_residual_forward.1} parent=31 // pred_region
        %s239 = smul.u32 2, %s20
        %p240 = scmp.lt.s32.totalorder %s19, 1
        %s241 = scalar_select %p240, %s19, 1
        %p242 = scmp.lt.s32.totalorder %s239, 1
        %s243 = scalar_select %p242, %s239, 1
        %s244 = smul.addr %s241, 2
        %s245 = sadd.s32 %s243, %s244
        %s246 = smul.addr %s245, 4
        %s247 = scalar_lea.vmem %s1, %s246
        %s248 = smul.u32 2, %s20
      $region40: #{mbconv_residual_forward.1} parent=31 // pred_fallthru
        _
    $region32: #{mbconv_residual_forward.1} parent=5 // pred_fallthru
      _
    %p249 = scmp.le.s32.totalorder 1, %s12
    %p250 = scmp.lt.s32.totalorder %s12, 3
    %p251 = pnand %p249, %p250
    %p252 = pneg %p251
    // Predicated region
    $region41: #{mbconv_residual_forward.1} parent=5 // pred_check
      _
    $region42: #{mbconv_residual_forward.1} parent=5 // pred_check_branch
      %254 = sbr.rel (%p251) target = $region44
    $region43: #{mbconv_residual_forward.1} parent=5 // pred_region
      %s255 = ssub.s32 %s12, 1
      %s256 = smul.u32 2, %s22
      %p257 = scmp.lt.s32.totalorder %s21, 1
      %s258 = scalar_select %p257, %s21, 1
      %p259 = scmp.lt.s32.totalorder %s256, 1
      %s260 = scalar_select %p259, %s256, 1
      %s261 = smul.addr %s258, 2
      %s262 = sadd.s32 %s260, %s261
      %s263 = smul.addr %s262, 2
      %s264 = scalar_lea.vmem %s0, %s263
      %p265 = pneg %p52
      %p266 = pneg %p49
      %s267 = smul.u32 2, %s22
      %p268 = scmp.lt.s32.totalorder %s21, 1
      %s269 = scalar_select %p268, %s21, 1
      %p270 = scmp.lt.s32.totalorder %s267, 1
      %s271 = scalar_select %p270, %s267, 1
      %s272 = smul.addr %s269, 2
      %s273 = sadd.s32 %s271, %s272
      %s274 = smul.addr %s273, 4
      %s275 = scalar_lea.vmem %s1, %s274
      %p276 = pneg %p80
      %p277 = pneg %p77
      %p278 = pneg %p101
      %p279 = pneg %p98
      %p280 = pneg %p122
      %p281 = pneg %p119
      %p282 = pneg %p143
      %p283 = pneg %p140
      %p284 = pneg %p164
      %p285 = pneg %p161
      %p286 = pneg %p192
      %p287 = pneg %p189
      %s288 = smul.u32 2, %s22
      %p289 = scmp.lt.s32.totalorder %s21, 1
      %s290 = scalar_select %p289, %s21, 1
      %p291 = scmp.lt.s32.totalorder %s288, 1
      %s292 = scalar_select %p291, %s288, 1
      %s293 = smul.addr %s290, 2
      %s294 = sadd.s32 %s292, %s293
      %s295 = smul.addr %s294, 4
      %s296 = scalar_lea.vmem %s6, %s295
      %s297 = smul.u32 2, %s22
      %p298 = scmp.lt.s32.totalorder %s21, 1
      %s299 = scalar_select %p298, %s21, 1
      %p300 = scmp.lt.s32.totalorder %s297, 1
      %s301 = scalar_select %p300, %s297, 1
      %s302 = smul.addr %s299, 2
      %s303 = sadd.s32 %s301, %s302
      %s304 = smul.addr %s303, 2
      %s305 = scalar_lea.vmem %s0, %s304
      %s306 = smul.u32 2, %s22
      %s307 = smul.u32 2, %s22
      %p308 = scmp.lt.s32.totalorder %s21, 1
      %s309 = scalar_select %p308, %s21, 1
      %p310 = scmp.lt.s32.totalorder %s307, 1
      %s311 = scalar_select %p310, %s307, 1
      %s312 = smul.addr %s309, 2
      %s313 = sadd.s32 %s311, %s312
      %s314 = smul.addr %s313, 4
      %s315 = scalar_lea.vmem %s1, %s314
      %s316 = smul.u32 2, %s22
      %s317 = smul.u32 2, %s22
      %p318 = scmp.lt.s32.totalorder %s21, 1
      %s319 = scalar_select %p318, %s21, 1
      %p320 = scmp.lt.s32.totalorder %s317, 1
      %s321 = scalar_select %p320, %s317, 1
      %s322 = smul.addr %s319, 2
      %s323 = sadd.s32 %s321, %s322
      %s324 = smul.addr %s323, 4
      %s325 = scalar_lea.vmem %s6, %s324
      %s326 = smul.u32 2, %s22
      %v328 = vld [vmem:[%s305] sm:$0xf]
      %v329 = vunpack.c.l.bf16 %v328
      %v330 = vld [vmem:[%s3] sm:$0xf]
      %332 = vset.pattern.permute.xlu0 0
      %333 = vperm.xlu0 %332, %v330
      %v334 = vpop.permute.xlu0 %333
      %v336 = vunpack.c.l.s4 839922192
      %v337 = vunpack.c.0.s8 %v336
      %v338 = vperm.slane %v334, %v337
      %v340 = vmul.f32 %v329, %v338
      %v341 = vld [vmem:[%s4] sm:$0xf]
      %343 = vset.pattern.permute.xlu0 0
      %344 = vperm.xlu0 %343, %v341
      %v345 = vpop.permute.xlu0 %344
      %v347 = vunpack.c.l.s4 839922192
      %v348 = vunpack.c.0.s8 %v347
      %v349 = vperm.slane %v345, %v348
      %v351 = vadd.f32 %v340, %v349
      %v352 = vmul.f32 %v351, 0.5
      %v353 = vmul.f32 %v351, 0.70710677
      %v354 = vand.u32 2147483647, %v353
      %v355 = vmul.f32 %v354, 0.3275911
      %v356 = vadd.f32 %v355, 1.0
      %v357 = vrcp.pop %v356
      %v358 = vmul.f32 %v356, %v357
      %v359 = vsub.f32 1.0, %v358
      %v360 = vmul.f32 %v357, %v359
      %v361 = vadd.f32 %v357, %v360
      %vm362 = vweird.f32 %v356
      %vm363 = vweird.f32 %v357
      %vm364 = vmor %vm362, %vm363
      %v365 = vsel %vm364, %v357, %v361
      %v366 = vand.u32 2147483647, %v356
      %vm367 = vcmp.eq.f32.partialorder %v366, 8.507059e+37
      %v368 = vand.u32 %v356, 2147483648
      %v369 = vor.u32 1.1754944e-38, %v368
      %v370 = vsel %vm367, %v369, %v365
      %v371 = vmul.f32 1.0, %v370
      %v372 = vmul.f32 %v371, 1.0614054
      %v373 = vadd.f32 %v372, -1.4531521
      %v374 = vmul.f32 %v371, %v373
      %v375 = vadd.f32 %v374, 1.4214138
      %v376 = vmul.f32 %v371, %v375
      %v377 = vadd.f32 %v376, -0.28449672
      %v378 = vmul.f32 %v371, %v377
      %v379 = vadd.f32 %v378, 0.2548296
      %v380 = vmul.f32 %v371, %v379
      %v381 = vsub.f32 0.0, %v354
      %v382 = vmul.f32 %v381, %v354
      %v383 = vmul.f32 %v382, 1.442695
      %v384 = vpow.pop %v383
      %v385 = vmul.f32 %v380, %v384
      %v386 = vsub.f32 1.0, %v385
      %vm387 = vcmp.ge.f32.partialorder %v353, 0.0
      %v388 = vsub.f32 0.0, %v386
      %v389 = vsel %vm387, %v386, %v388
      %v390 = vadd.f32 %v389, 1.0
      %v391 = vmul.f32 %v352, %v390
      %v392 = vld [vmem:[%s2] sm:$0xf]
      %394 = vst [vmem:[#allocation1] ss:$2 sm:$0xff] %v391
      %v395 = vld.sshfl [vmem:[#allocation1] sm:$0xff pattern:$0x75316420]
      %v396 = vld.sshfl [vmem:[#allocation1 + $0x8] sm:$0xff pattern:$0x75316420]
      %v399 = vpack.c.bf16 %v395, %v395
      %v400 = vpack.c.bf16 %v396, %v396
      %v401 = vld [vmem:[%s5] sm:$0xff]
      %403 = vset.pattern.permute.xlu0 0
      %404 = vperm.xlu0 %403, %v401
      %v405 = vpop.permute.xlu0 %404
      %vm407 = vcmask 31744
      %v409 = vsel %vm407, %v392, 0
      %vm411 = vcmask 1041408
      %v413 = vsel %vm411, %v399, 0
      %v416 = vsel %vm411, %v400, 0
      %418 = vmatpush.bf16.msra.mxu0 0
      %419 = vmatpush.bf16.msra.mxu0 0
      %420 = vmatpush.bf16.msra.mxu0 0
      %421 = vmatpush.bf16.msra.mxu0 0
      %422 = vmatpush.bf16.msra.mxu0 0
      %423 = vmatpush.bf16.msra.mxu0 0
      %424 = vmatpush.bf16.msra.mxu0 0
      %425 = vmatpush.bf16.msra.mxu0 %v413
      %426 = vmatmul.bf16.gmra.mxu0 %v409
      %v427 = vpop.f32.mrf.mxu0
      %v428 = vadd.f32 %v405, %v427
      %v429 = vpop.f32.mrf.mxu0
      %430 = vdwg.mxu0
      %431 = vmatpush.bf16.msra.mxu0 0
      %432 = vmatpush.bf16.msra.mxu0 0
      %433 = vmatpush.bf16.msra.mxu0 0
      %434 = vmatpush.bf16.msra.mxu0 0
      %435 = vmatpush.bf16.msra.mxu0 0
      %436 = vmatpush.bf16.msra.mxu0 0
      %437 = vmatpush.bf16.msra.mxu0 0
      %438 = vmatpush.bf16.msra.mxu0 %v416
      %439 = vmatmul.bf16.gmra.mxu0 %v409
      %v440 = vpop.f32.mrf.mxu0
      %v441 = vadd.f32 %v405, %v440
      %v442 = vpop.f32.mrf.mxu0
      %443 = vdwg.mxu0
      %v444 = vld [vmem:[%s315] sm:$0xff]
      %v445 = vunpack.c.l.bf16 %v444
      %v446 = vunpack.c.h.bf16 %v444
      %v447 = vadd.f32 %v428, %v445
      %v448 = vadd.f32 %v441, %v446
      %v449 = vpack.c.bf16 %v448, %v447
      %450 = vst [vmem:[%s325] sm:$0xff] %v449
      %s451 = smul.u32 2, %s22
      %p452 = scmp.lt.s32.totalorder %s21, 1
      %s453 = scalar_select %p452, %s21, 1
      %p454 = scmp.lt.s32.totalorder %s451, 1
      %s455 = scalar_select %p454, %s451, 1
      %s456 = smul.addr %s453, 2
      %s457 = sadd.s32 %s455, %s456
      %s458 = smul.addr %s457, 4
      %s459 = scalar_lea.vmem %s6, %s458
      // Predicated region
      $region45: #{mbconv_residual_forward.1} parent=43 // pred_check
        %p460 = pneg %p189
      $region46: #{mbconv_residual_forward.1} parent=43 // pred_check_branch
        %462 = sbr.rel (%p460) target = $region48
      $region47: #{mbconv_residual_forward.1} parent=43 // pred_region
        %s463 = smul.u32 2, %s22
      $region48: #{mbconv_residual_forward.1} parent=43 // pred_fallthru
        _
    $region44: #{mbconv_residual_forward.1} parent=5 // pred_fallthru
      _
    %p464 = scmp.le.s32.totalorder 2, %s12
    // Predicated region
    $region49: #{mbconv_residual_forward.1} parent=5 // pred_check
      %p465 = pneg %p464
    $region50: #{mbconv_residual_forward.1} parent=5 // pred_check_branch
      %467 = sbr.rel (%p465) target = $region52
    $region51: #{mbconv_residual_forward.1} parent=5 // pred_region
      %s468 = ssub.s32 %s12, 2
      // Predicated region
      $region53: #{mbconv_residual_forward.1} parent=51 // pred_check
        %p469 = pneg %p195
      $region54: #{mbconv_residual_forward.1} parent=51 // pred_check_branch
        %471 = sbr.rel (%p469) target = $region56
      $region55: #{mbconv_residual_forward.1} parent=51 // pred_region
        %s472 = smul.u32 2, %s24
        %p473 = scmp.lt.s32.totalorder %s23, 1
        %s474 = scalar_select %p473, %s23, 1
        %p475 = scmp.lt.s32.totalorder %s472, 1
        %s476 = scalar_select %p475, %s472, 1
        %s477 = smul.addr %s474, 2
        %s478 = sadd.s32 %s476, %s477
        %s479 = smul.addr %s478, 4
        %s480 = scalar_lea.vmem %s6, %s479
      $region56: #{mbconv_residual_forward.1} parent=51 // pred_fallthru
        _
    $region52: #{mbconv_residual_forward.1} parent=5 // pred_fallthru
      _
  $region6: #{mbconv_residual_forward.1} parent=0 // loop_footer
    %s16 = sadd.s32 1, %s12
  $region7: #{mbconv_residual_forward.1} parent=0 // loop_footer_branch
    %11 = sbr.rel target = $region3
  $region8: #{mbconv_residual_forward.1} parent=0 // loop_exit
    _

</llo_original>
